<compile_context>
chip_gen: v7x
topology: tpu7x:2x2x1
jax: 0.10.0
libtpu: 0.0.40
codegen_flags: <defaults>
</compile_context>

<pallas_src>
import functools

import numpy as np
import jax
import jax.numpy as jnp
from jax.experimental import pallas as pl
from jax.experimental.pallas import tpu as pltpu


# --------------------------------------------------------------------------- #
# Hardware query / tiling heuristics
# --------------------------------------------------------------------------- #

def _vmem_capacity_bytes():
    """Per-TensorCore VMEM capacity; conservative 64 MiB (v7x) if query fails."""
    try:
        return int(pltpu.get_tpu_info().vmem_capacity_bytes)
    except Exception:
        return 64 * 1024 * 1024


def _pick_spatial_tile(C, S, itemsize, vmem_budget):
    """Lane-dense spatial tile for the two-pass fallback (multiple of 128).

    Targets a few MiB per buffer (measured: >=512-wide tiles reach ~85% of the
    HBM roofline; 128-wide only ~29%), capped so the double-buffered in+out
    tiles comfortably fit the VMEM budget.
    """
    target_bytes = 4 * 1024 * 1024
    ts = (target_bytes // max(C * itemsize, 1)) // 128 * 128
    cap = (vmem_budget // max(6 * C * itemsize, 1)) // 128 * 128
    ts = min(ts, cap)
    ts = min(ts, ((S + 127) // 128) * 128)
    return max(ts, 128)


# --------------------------------------------------------------------------- #
# Kernels
# --------------------------------------------------------------------------- #

def _se_single_pass_kernel(x_ref, w1_ref, b1_ref, w2_ref, b2_ref, o_ref, *,
                           inv_spatial):
    """Whole per-batch (C, S) slab resident: squeeze + excite + rescale."""
    # Squeeze: f32 accumulation over the lane (spatial) axis -> (C, 1).
    sq = jnp.sum(x_ref[0].astype(jnp.float32), axis=1, keepdims=True) * inv_spatial

    # Excite: fc1 -> ReLU -> fc2 -> sigmoid on a (C, 1) column, all in f32.
    h = jnp.dot(w1_ref[...], sq, preferred_element_type=jnp.float32) + b1_ref[...]
    h = jnp.maximum(h, 0.0)
    s = jnp.dot(w2_ref[...], h, preferred_element_type=jnp.float32) + b2_ref[...]
    scale = jax.nn.sigmoid(s)                                    # (C, 1)

    # Rescale: re-read the slab (second streaming pass, bounded live ranges),
    # per-channel scalar broadcast over the dense lane axis, cast at the store.
    o_ref[0] = (x_ref[0].astype(jnp.float32) * scale).astype(o_ref.dtype)


def _se_sum_kernel(x_ref, sum_ref):
    """Two-pass fallback, pass 1: per-channel spatial sums, f32 accumulation."""
    @pl.when(pl.program_id(1) == 0)
    def _():
        sum_ref[...] = jnp.zeros_like(sum_ref)
    sum_ref[0] += jnp.sum(x_ref[0].astype(jnp.float32), axis=1, keepdims=True)


def _se_rescale_kernel(x_ref, scale_ref, o_ref):
    """Two-pass fallback, pass 2: apply per-channel scale to a spatial tile."""
    o_ref[0] = (x_ref[0].astype(jnp.float32) * scale_ref[0]).astype(o_ref.dtype)


# --------------------------------------------------------------------------- #
# Host wrapper
# --------------------------------------------------------------------------- #

def channel_se_3d(x, w1, b1, w2, b2, *, force_two_pass=False, tile_s=None):
    """x: (N, C, D, H, W); w1: (Cr, C); b1: (Cr,); w2: (C, Cr); b2: (C,)."""
    N, C, D, H, W = x.shape
    S = D * H * W
    Cr = w1.shape[0]
    itemsize = jnp.dtype(x.dtype).itemsize
    inv_spatial = 1.0 / float(S)

    vmem_cap = _vmem_capacity_bytes()
    vmem_budget = int(vmem_cap * 0.88)          # leave headroom for Mosaic scratch

    x2 = x.reshape(N, C, S)

    # Single-pass feasibility: default Buffered(2) on the input and the output
    # slab -> 4 copies, plus the (tiny, double-buffered) weights and headroom.
    s_pad128 = ((S + 127) // 128) * 128
    slab_bytes = C * s_pad128 * itemsize
    weights_bytes = (Cr * C + C * Cr + Cr + C) * 4
    single_pass_need = 4 * slab_bytes + 2 * weights_bytes + (2 << 20)

    use_single_pass = (not force_two_pass) and (single_pass_need <= vmem_budget)

    if use_single_pass:
        S_pad = s_pad128
        x2p = jnp.pad(x2, ((0, 0), (0, 0), (0, S_pad - S))) if S_pad != S else x2
        w1f = w1.astype(jnp.float32)
        w2f = w2.astype(jnp.float32)
        b1c = b1.reshape(Cr, 1).astype(jnp.float32)
        b2c = b2.reshape(C, 1).astype(jnp.float32)

        kern = functools.partial(_se_single_pass_kernel, inv_spatial=inv_spatial)
        out2 = pl.pallas_call(
            kern,
            out_shape=jax.ShapeDtypeStruct((N, C, S_pad), x.dtype),
            grid=(N,),
            in_specs=[
                pl.BlockSpec((1, C, S_pad), lambda n: (n, 0, 0)),   # per-batch slab
                pl.BlockSpec((Cr, C), lambda n: (0, 0)),            # fc1 weight
                pl.BlockSpec((Cr, 1), lambda n: (0, 0)),            # fc1 bias column
                pl.BlockSpec((C, Cr), lambda n: (0, 0)),            # fc2 weight
                pl.BlockSpec((C, 1), lambda n: (0, 0)),             # fc2 bias column
            ],
            out_specs=pl.BlockSpec((1, C, S_pad), lambda n: (n, 0, 0)),
            compiler_params=pltpu.CompilerParams(
                dimension_semantics=("parallel",),
                vmem_limit_bytes=vmem_budget),
        )(x2p, w1f, b1c, w2f, b2c)
    else:
        # ---------------- two-pass spatial-tiled fallback ---------------- #
        TS = tile_s if tile_s is not None else _pick_spatial_tile(
            C, S, itemsize, vmem_budget)
        TS = max(128, (TS // 128) * 128)
        S_pad = ((S + TS - 1) // TS) * TS
        x2p = jnp.pad(x2, ((0, 0), (0, 0), (0, S_pad - S))) if S_pad != S else x2
        n_tiles = S_pad // TS

        # Pass 1: per-channel sums over S-tiles (zero padding does not bias them).
        sums = pl.pallas_call(
            _se_sum_kernel,
            out_shape=jax.ShapeDtypeStruct((N, C, 1), jnp.float32),
            grid=(N, n_tiles),
            in_specs=[pl.BlockSpec((1, C, TS), lambda n, s: (n, 0, s))],
            out_specs=pl.BlockSpec((1, C, 1), lambda n, s: (n, 0, 0)),
            compiler_params=pltpu.CompilerParams(
                dimension_semantics=("parallel", "arbitrary"),
                vmem_limit_bytes=vmem_budget),
        )(x2p)

        # Tiny excitation FC chain in plain XLA: (N, C) -> (N, Cr) -> (N, C).
        mean = sums[:, :, 0] * inv_spatial
        h = jnp.maximum(mean @ w1.astype(jnp.float32).T + b1.astype(jnp.float32), 0.0)
        scale = jax.nn.sigmoid(h @ w2.astype(jnp.float32).T + b2.astype(jnp.float32))
        scale3 = scale[:, :, None]                                  # (N, C, 1) f32

        # Pass 2: rescale; both grid axes independent -> fully parallel.
        out2 = pl.pallas_call(
            _se_rescale_kernel,
            out_shape=jax.ShapeDtypeStruct((N, C, S_pad), x.dtype),
            grid=(N, n_tiles),
            in_specs=[
                pl.BlockSpec((1, C, TS), lambda n, s: (n, 0, s)),
                pl.BlockSpec((1, C, 1), lambda n, s: (n, 0, 0)),
            ],
            out_specs=pl.BlockSpec((1, C, TS), lambda n, s: (n, 0, s)),
            compiler_params=pltpu.CompilerParams(
                dimension_semantics=("parallel", "parallel"),
                vmem_limit_bytes=vmem_budget),
        )(x2p, scale3)

    if out2.shape[-1] != S:
        out2 = out2[:, :, :S]
    return out2.reshape(N, C, D, H, W)


# ---------------- pure-JAX reference (mirrors PyTorch semantics) ---------------- #

def ref_forward(x, w1, b1, w2, b2):
    sq = x.astype(jnp.float32).mean(axis=(2, 3, 4))            # (N, C)
    h = jnp.maximum(sq @ w1.T + b1, 0.0)                       # (N, Cr)
    s = jax.nn.sigmoid(h @ w2.T + b2)                          # (N, C)
    return x.astype(jnp.float32) * s[:, :, None, None, None]


if __name__ == "__main__":
    N, C, D, H, W = 2, 16, 7, 8, 9            # S = 504 -> exercises the S%128 padding
    reduction_ratio = 2
    Cr = C // reduction_ratio

    key = jax.random.PRNGKey(0)
    ks = jax.random.split(key, 5)
    x = jax.random.normal(ks[0], (N, C, D, H, W), jnp.float32)       # NCDHW, like PyTorch
    w1 = jax.random.normal(ks[1], (Cr, C), jnp.float32) * 0.3        # nn.Linear(C, Cr).weight
    b1 = jax.random.normal(ks[2], (Cr,), jnp.float32) * 0.1
    w2 = jax.random.normal(ks[3], (C, Cr), jnp.float32) * 0.3        # nn.Linear(Cr, C).weight
    b2 = jax.random.normal(ks[4], (C,), jnp.float32) * 0.1

    ref = ref_forward(x, w1, b1, w2, b2)

    # 1) single-pass slab-resident path, f32
    out = jax.block_until_ready(channel_se_3d(x, w1, b1, w2, b2))
    np.testing.assert_allclose(np.asarray(out), np.asarray(ref), rtol=1e-4, atol=1e-4)

    # 2) two-pass spatial-tiled fallback (forced, 128-wide tiles -> 4 S-tiles), f32
    out_tp = jax.block_until_ready(
        channel_se_3d(x, w1, b1, w2, b2, force_two_pass=True, tile_s=128))
    np.testing.assert_allclose(np.asarray(out_tp), np.asarray(ref), rtol=1e-4, atol=1e-4)

    # 3) bf16 I/O (f32 accumulation inside), single-pass path
    out_bf = jax.block_until_ready(
        channel_se_3d(x.astype(jnp.bfloat16), w1, b1, w2, b2))
    np.testing.assert_allclose(np.asarray(out_bf, dtype=np.float32), np.asarray(ref),
                               rtol=5e-2, atol=5e-2)

    print("KERNEL_OK")
</pallas_src>

<mosaic_0001>
module attributes {stable_mosaic.version = 11 : i64} {
  func.func @_se_single_pass_kernel(%arg0: i32, %arg1: memref<1x16x512xf32, #tpu.memory_space<vmem>>, %arg2: memref<8x16xf32, #tpu.memory_space<vmem>>, %arg3: memref<8x1xf32, #tpu.memory_space<vmem>>, %arg4: memref<16x8xf32, #tpu.memory_space<vmem>>, %arg5: memref<16x1xf32, #tpu.memory_space<vmem>>, %arg6: memref<1x16x512xf32, #tpu.memory_space<vmem>>) attributes {dimension_semantics = [#tpu.dimension_semantics<parallel>], iteration_bounds = array<i64: 2>, scalar_prefetch = 0 : i64, scratch_operands = 0 : i64, tpu.core_type = #tpu.core_type<tc>, window_params = [{transform_indices = @transform_0, window_bounds = array<i64: 1, 16, 512>}, {pipeline_mode = #tpu.pipeline_mode<synchronous>, transform_indices = @transform_1, window_bounds = array<i64: 8, 16>}, {pipeline_mode = #tpu.pipeline_mode<synchronous>, transform_indices = @transform_2, window_bounds = array<i64: 8, 1>}, {pipeline_mode = #tpu.pipeline_mode<synchronous>, transform_indices = @transform_3, window_bounds = array<i64: 16, 8>}, {pipeline_mode = #tpu.pipeline_mode<synchronous>, transform_indices = @transform_4, window_bounds = array<i64: 16, 1>}, {transform_indices = @transform_5, window_bounds = array<i64: 1, 16, 512>}]} {
    %c0 = arith.constant 0 : index
    %c0_0 = arith.constant 0 : index
    %c0_1 = arith.constant 0 : index
    %0 = vector.load %arg1[%c0, %c0_0, %c0_1] : memref<1x16x512xf32, #tpu.memory_space<vmem>>, vector<1x16x512xf32>
    %1 = vector.shape_cast %0 : vector<1x16x512xf32> to vector<16x512xf32>
    %cst = arith.constant dense<0.000000e+00> : vector<16xf32>
    %2 = vector.multi_reduction <add>, %1, %cst [1] : vector<16x512xf32> to vector<16xf32>
    %3 = vector.shape_cast %2 : vector<16xf32> to vector<16x1xf32>
    %cst_2 = arith.constant 0.0019841271 : f32
    %4 = vector.broadcast %cst_2 : f32 to vector<16x1xf32>
    %5 = arith.mulf %3, %4 : vector<16x1xf32>
    %c0_3 = arith.constant 0 : index
    %c0_4 = arith.constant 0 : index
    %6 = vector.load %arg2[%c0_3, %c0_4] : memref<8x16xf32, #tpu.memory_space<vmem>>, vector<8x16xf32>
    %cst_5 = arith.constant dense<0.000000e+00> : vector<8x1xf32>
    %7 = tpu.matmul %6, %5, %cst_5 {dimension_numbers = #tpu.dot_dimension_numbers<[1], [0], [0], [1], [0, 0, 1, 1], [], []>} : vector<8x16xf32>, vector<16x1xf32>, vector<8x1xf32> -> vector<8x1xf32>
    %c0_6 = arith.constant 0 : index
    %c0_7 = arith.constant 0 : index
    %8 = vector.load %arg3[%c0_6, %c0_7] : memref<8x1xf32, #tpu.memory_space<vmem>>, vector<8x1xf32>
    %9 = arith.addf %7, %8 : vector<8x1xf32>
    %cst_8 = arith.constant 0.000000e+00 : f32
    %10 = vector.broadcast %cst_8 : f32 to vector<8x1xf32>
    %11 = arith.maximumf %9, %10 : vector<8x1xf32>
    %c0_9 = arith.constant 0 : index
    %c0_10 = arith.constant 0 : index
    %12 = vector.load %arg4[%c0_9, %c0_10] : memref<16x8xf32, #tpu.memory_space<vmem>>, vector<16x8xf32>
    %cst_11 = arith.constant dense<0.000000e+00> : vector<16x1xf32>
    %13 = tpu.matmul %12, %11, %cst_11 {dimension_numbers = #tpu.dot_dimension_numbers<[1], [0], [0], [1], [0, 0, 1, 1], [], []>} : vector<16x8xf32>, vector<8x1xf32>, vector<16x1xf32> -> vector<16x1xf32>
    %c0_12 = arith.constant 0 : index
    %c0_13 = arith.constant 0 : index
    %14 = vector.load %arg5[%c0_12, %c0_13] : memref<16x1xf32, #tpu.memory_space<vmem>>, vector<16x1xf32>
    %15 = arith.addf %13, %14 : vector<16x1xf32>
    %16 = arith.negf %15 : vector<16x1xf32>
    %17 = math.exp %16 : vector<16x1xf32>
    %cst_14 = arith.constant 1.000000e+00 : f32
    %18 = vector.broadcast %cst_14 : f32 to vector<16x1xf32>
    %19 = arith.addf %18, %17 : vector<16x1xf32>
    %20 = arith.divf %18, %19 : vector<16x1xf32>
    %c0_15 = arith.constant 0 : index
    %c0_16 = arith.constant 0 : index
    %c0_17 = arith.constant 0 : index
    %21 = vector.load %arg1[%c0_15, %c0_16, %c0_17] : memref<1x16x512xf32, #tpu.memory_space<vmem>>, vector<1x16x512xf32>
    %22 = vector.shape_cast %21 : vector<1x16x512xf32> to vector<16x512xf32>
    %23 = vector.broadcast %20 : vector<16x1xf32> to vector<16x512xf32>
    %24 = arith.mulf %22, %23 : vector<16x512xf32>
    %c0_18 = arith.constant 0 : index
    %c0_19 = arith.constant 0 : index
    %c0_20 = arith.constant 0 : index
    %25 = vector.load %arg6[%c0_18, %c0_19, %c0_20] : memref<1x16x512xf32, #tpu.memory_space<vmem>>, vector<1x16x512xf32>
    %26 = vector.shape_cast %25 : vector<1x16x512xf32> to vector<16x512xf32>
    %27 = vector.shape_cast %24 : vector<16x512xf32> to vector<1x16x512xf32>
    tpu.vector_store %arg6[%c0_18, %c0_19, %c0_20], %27 {strides = array<i32>} : memref<1x16x512xf32, #tpu.memory_space<vmem>>, vector<1x16x512xf32>,
    return
  }
  func.func @transform_0(%arg0: i32) -> (i32, i32, i32) {
    %c0_i32 = arith.constant 0 : i32
    %c0_i32_0 = arith.constant 0 : i32
    %c0_i32_1 = arith.constant 0 : i32
    return %arg0, %c0_i32, %c0_i32_0 : i32, i32, i32
  }
  func.func @transform_1(%arg0: i32) -> (i32, i32) {
    %c0_i32 = arith.constant 0 : i32
    %c0_i32_0 = arith.constant 0 : i32
    %c0_i32_1 = arith.constant 0 : i32
    return %c0_i32, %c0_i32_0 : i32, i32
  }
  func.func @transform_2(%arg0: i32) -> (i32, i32) {
    %c0_i32 = arith.constant 0 : i32
    %c0_i32_0 = arith.constant 0 : i32
    %c0_i32_1 = arith.constant 0 : i32
    return %c0_i32, %c0_i32_0 : i32, i32
  }
  func.func @transform_3(%arg0: i32) -> (i32, i32) {
    %c0_i32 = arith.constant 0 : i32
    %c0_i32_0 = arith.constant 0 : i32
    %c0_i32_1 = arith.constant 0 : i32
    return %c0_i32, %c0_i32_0 : i32, i32
  }
  func.func @transform_4(%arg0: i32) -> (i32, i32) {
    %c0_i32 = arith.constant 0 : i32
    %c0_i32_0 = arith.constant 0 : i32
    %c0_i32_1 = arith.constant 0 : i32
    return %c0_i32, %c0_i32_0 : i32, i32
  }
  func.func @transform_5(%arg0: i32) -> (i32, i32, i32) {
    %c0_i32 = arith.constant 0 : i32
    %c0_i32_0 = arith.constant 0 : i32
    %c0_i32_1 = arith.constant 0 : i32
    return %arg0, %c0_i32, %c0_i32_0 : i32, i32, i32
  }
}

</mosaic_0001>

<llo_original>
// kernel: tpu_custom_call.1
$region0: #{tpu_custom_call.1}
  #allocation0 [shape = 'u32[]', space=smem, size = 0x4, offset = 0x4, fixed_abs, tag = 'smem constant byte address 0x4 - core index']
  #allocation1 [shape = 'u32[144,128]{1,0:T(1,128)}', space=vmem, size = 0x12000, scoped, tag = 'internal scratch']
  %s0 = inlined_call_operand.hbm [shape: f32[2,16,512], index: 0, kind: input, shape index: {}]
  %s1 = inlined_call_operand.vmem [shape: f32[8,16], index: 1, kind: input, shape index: {}]
  %s2 = inlined_call_operand.vmem [shape: f32[8,1], index: 2, kind: input, shape index: {}]
  %s3 = inlined_call_operand.vmem [shape: f32[16,8], index: 3, kind: input, shape index: {}]
  %s4 = inlined_call_operand.vmem [shape: f32[16,1], index: 4, kind: input, shape index: {}]
  %s5 = inlined_call_operand.hbm [shape: f32[2,16,512], index: 5, kind: output, shape index: {}]
  %s6 = sld [smem:[#allocation0]]
  $region57: #{tpu_custom_call.1} parent=0
    _
  %s8 = ssub.s32 1, %s6
  %s9 = scalar_select 0, %s8, %s6
  $region1: #{tpu_custom_call.1} parent=0
    #allocation2 [shape = 'u8[65536]{0}', space=vmem, size = 0x10000, scoped, tag = 'input window, operand 0']
    #allocation3 [shape = 's32[2]{0}', space=sflag, size = 0x8, scoped, tag = 'scoped memory for tpu_custom_call.1']
    #allocation4 [shape = 's32[2]{0}', space=sflag, size = 0x8, scoped, tag = 'scoped memory for tpu_custom_call.1']
    #allocation5 [shape = 'u8[65536]{0}', space=vmem, size = 0x10000, scoped, tag = 'output window, operand 0']
    %10 = vsyncpa [#allocation3], 0
    %s11 = scalar_lea.sflag [#allocation3], 1
    %12 = vsyncpa %s11, 0
    %13 = vsyncpa [#allocation4], 0
    %s14 = scalar_lea.sflag [#allocation4], 1
    %15 = vsyncpa %s14, 0
    loop: start=0, step=1, limit=4
    $region2: #{tpu_custom_call.1} parent=1 // loop_pre_header
      _
    $region3: #{tpu_custom_call.1} parent=1 // loop_header
      %s17 = sphi 0, %s21
      %p18 = scmp.ge.s32.totalorder %s17, 4
      %s27 = sphi 0, %s29
      %s30 = sphi 0, %s27
      %s31 = sphi 0, %s30
      %s47 = sphi 0, %s31
      %s51 = sphi 0, %s51
      %s53 = sphi 0, %s51
      %s54 = sphi 0, %s53
      %s68 = sphi 0, %s54
      %s72 = sphi 0, %s72
      %s74 = sphi 0, %s72
      %s75 = sphi 0, %s74
      %s89 = sphi 0, %s75
      %s93 = sphi 0, %s93
      %s95 = sphi 0, %s93
      %s96 = sphi 0, %s95
      %s110 = sphi 0, %s96
      %s114 = sphi 0, %s114
      %s116 = sphi 0, %s114
      %s117 = sphi 0, %s116
      %s131 = sphi 0, %s117
      %s137 = sphi 0, %s139
      %s140 = sphi 0, %s137
      %s141 = sphi 0, %s140
      %s157 = sphi 0, %s141
    $region4: #{tpu_custom_call.1} parent=1 // loop_header_branch
      %20 = sbr.rel (%p18) target = $region8
    $region5: #{tpu_custom_call.1} parent=1 // loop_body
      %s22 = ssub.s32 %s17, 1
      %s23 = ssub.s32 %s17, 2
      %s24 = sadd.s32 %s17, 1
      %s25 = ssub.s32 %s17, %s24
      %p26 = scmp.eq.s32.totalorder %s25, 0
      %s28 = sadd.s32 %s27, 1
      %s29 = scalar_select %p26, %s27, %s28
      %p32 = pneg %p26
      %p33 = scmp.eq.s32.totalorder %s17, 1
      %p34 = por %p32, %p33
      %p35 = scmp.ne.s32.totalorder %s27, %s30
      %p36 = scmp.eq.s32.totalorder %s17, 0
      %p37 = por %p35, %p36
      %p38 = scmp.ne.s32.totalorder %s27, %s30
      %p39 = scmp.eq.s32.totalorder %s22, 1
      %p40 = por %p38, %p39
      %p41 = scmp.ne.s32.totalorder %s30, %s31
      %p42 = scmp.eq.s32.totalorder %s22, 0
      %p43 = por %p41, %p42
      %p44 = scmp.ne.s32.totalorder %s30, %s31
      %p45 = scmp.eq.s32.totalorder %s23, 1
      %p46 = por %p44, %p45
      %p48 = scmp.ne.s32.totalorder %s31, %s47
      %p49 = scmp.eq.s32.totalorder %s23, 0
      %p50 = por %p48, %p49
      %s52 = sadd.s32 %s51, 1
      %p55 = scmp.eq.s32.totalorder %s17, 1
      %p56 = scmp.ne.s32.totalorder %s51, %s53
      %p57 = scmp.eq.s32.totalorder %s17, 0
      %p58 = por %p56, %p57
      %p59 = scmp.ne.s32.totalorder %s51, %s53
      %p60 = scmp.eq.s32.totalorder %s22, 1
      %p61 = por %p59, %p60
      %p62 = scmp.ne.s32.totalorder %s53, %s54
      %p63 = scmp.eq.s32.totalorder %s22, 0
      %p64 = por %p62, %p63
      %p65 = scmp.ne.s32.totalorder %s53, %s54
      %p66 = scmp.eq.s32.totalorder %s23, 1
      %p67 = por %p65, %p66
      %p69 = scmp.ne.s32.totalorder %s54, %s68
      %p70 = scmp.eq.s32.totalorder %s23, 0
      %p71 = por %p69, %p70
      %s73 = sadd.s32 %s72, 1
      %p76 = scmp.eq.s32.totalorder %s17, 1
      %p77 = scmp.ne.s32.totalorder %s72, %s74
      %p78 = scmp.eq.s32.totalorder %s17, 0
      %p79 = por %p77, %p78
      %p80 = scmp.ne.s32.totalorder %s72, %s74
      %p81 = scmp.eq.s32.totalorder %s22, 1
      %p82 = por %p80, %p81
      %p83 = scmp.ne.s32.totalorder %s74, %s75
      %p84 = scmp.eq.s32.totalorder %s22, 0
      %p85 = por %p83, %p84
      %p86 = scmp.ne.s32.totalorder %s74, %s75
      %p87 = scmp.eq.s32.totalorder %s23, 1
      %p88 = por %p86, %p87
      %p90 = scmp.ne.s32.totalorder %s75, %s89
      %p91 = scmp.eq.s32.totalorder %s23, 0
      %p92 = por %p90, %p91
      %s94 = sadd.s32 %s93, 1
      %p97 = scmp.eq.s32.totalorder %s17, 1
      %p98 = scmp.ne.s32.totalorder %s93, %s95
      %p99 = scmp.eq.s32.totalorder %s17, 0
      %p100 = por %p98, %p99
      %p101 = scmp.ne.s32.totalorder %s93, %s95
      %p102 = scmp.eq.s32.totalorder %s22, 1
      %p103 = por %p101, %p102
      %p104 = scmp.ne.s32.totalorder %s95, %s96
      %p105 = scmp.eq.s32.totalorder %s22, 0
      %p106 = por %p104, %p105
      %p107 = scmp.ne.s32.totalorder %s95, %s96
      %p108 = scmp.eq.s32.totalorder %s23, 1
      %p109 = por %p107, %p108
      %p111 = scmp.ne.s32.totalorder %s96, %s110
      %p112 = scmp.eq.s32.totalorder %s23, 0
      %p113 = por %p111, %p112
      %s115 = sadd.s32 %s114, 1
      %p118 = scmp.eq.s32.totalorder %s17, 1
      %p119 = scmp.ne.s32.totalorder %s114, %s116
      %p120 = scmp.eq.s32.totalorder %s17, 0
      %p121 = por %p119, %p120
      %p122 = scmp.ne.s32.totalorder %s114, %s116
      %p123 = scmp.eq.s32.totalorder %s22, 1
      %p124 = por %p122, %p123
      %p125 = scmp.ne.s32.totalorder %s116, %s117
      %p126 = scmp.eq.s32.totalorder %s22, 0
      %p127 = por %p125, %p126
      %p128 = scmp.ne.s32.totalorder %s116, %s117
      %p129 = scmp.eq.s32.totalorder %s23, 1
      %p130 = por %p128, %p129
      %p132 = scmp.ne.s32.totalorder %s117, %s131
      %p133 = scmp.eq.s32.totalorder %s23, 0
      %p134 = por %p132, %p133
      %s135 = ssub.s32 %s17, %s24
      %p136 = scmp.eq.s32.totalorder %s135, 0
      %s138 = sadd.s32 %s137, 1
      %s139 = scalar_select %p136, %s137, %s138
      %p142 = pneg %p136
      %p143 = scmp.eq.s32.totalorder %s17, 1
      %p144 = por %p142, %p143
      %p145 = scmp.ne.s32.totalorder %s137, %s140
      %p146 = scmp.eq.s32.totalorder %s17, 0
      %p147 = por %p145, %p146
      %p148 = scmp.ne.s32.totalorder %s137, %s140
      %p149 = scmp.eq.s32.totalorder %s22, 1
      %p150 = por %p148, %p149
      %p151 = scmp.ne.s32.totalorder %s140, %s141
      %p152 = scmp.eq.s32.totalorder %s22, 0
      %p153 = por %p151, %p152
      %p154 = scmp.ne.s32.totalorder %s140, %s141
      %p155 = scmp.eq.s32.totalorder %s23, 1
      %p156 = por %p154, %p155
      %p158 = scmp.ne.s32.totalorder %s141, %s157
      %p159 = scmp.eq.s32.totalorder %s23, 0
      %p160 = por %p158, %p159
      %p161 = scmp.le.s32.totalorder 1, %s17
      %p162 = scmp.lt.s32.totalorder %s17, 3
      %p163 = pnand %p161, %p162
      %p164 = pneg %p163
      // Predicated region
      $region9: #{tpu_custom_call.1} parent=5 // pred_check
        _
      $region10: #{tpu_custom_call.1} parent=5 // pred_check_branch
        %166 = sbr.rel (%p163) target = $region12
      $region11: #{tpu_custom_call.1} parent=5 // pred_region
        %s167 = ssub.s32 %s17, 1
        // Predicated region
        $region13: #{tpu_custom_call.1} parent=11 // pred_check
          %p168 = pneg %p64
        $region14: #{tpu_custom_call.1} parent=11 // pred_check_branch
          %170 = sbr.rel (%p168) target = $region16
        $region15: #{tpu_custom_call.1} parent=11 // pred_region
          _
        $region16: #{tpu_custom_call.1} parent=11 // pred_fallthru
          _
        // Predicated region
        $region17: #{tpu_custom_call.1} parent=11 // pred_check
          %p171 = pneg %p85
        $region18: #{tpu_custom_call.1} parent=11 // pred_check_branch
          %173 = sbr.rel (%p171) target = $region20
        $region19: #{tpu_custom_call.1} parent=11 // pred_region
          _
        $region20: #{tpu_custom_call.1} parent=11 // pred_fallthru
          _
        // Predicated region
        $region21: #{tpu_custom_call.1} parent=11 // pred_check
          %p174 = pneg %p106
        $region22: #{tpu_custom_call.1} parent=11 // pred_check_branch
          %176 = sbr.rel (%p174) target = $region24
        $region23: #{tpu_custom_call.1} parent=11 // pred_region
          _
        $region24: #{tpu_custom_call.1} parent=11 // pred_fallthru
          _
        // Predicated region
        $region25: #{tpu_custom_call.1} parent=11 // pred_check
          %p177 = pneg %p127
        $region26: #{tpu_custom_call.1} parent=11 // pred_check_branch
          %179 = sbr.rel (%p177) target = $region28
        $region27: #{tpu_custom_call.1} parent=11 // pred_region
          _
        $region28: #{tpu_custom_call.1} parent=11 // pred_fallthru
          _
      $region12: #{tpu_custom_call.1} parent=5 // pred_fallthru
        _
      %p180 = scmp.lt.s32.totalorder %s17, 2
      // Predicated region
      $region29: #{tpu_custom_call.1} parent=5 // pred_check
        %p181 = pneg %p180
      $region30: #{tpu_custom_call.1} parent=5 // pred_check_branch
        %183 = sbr.rel (%p181) target = $region32
      $region31: #{tpu_custom_call.1} parent=5 // pred_region
        // Predicated region
        $region33: #{tpu_custom_call.1} parent=31 // pred_check
          %p184 = pneg %p37
        $region34: #{tpu_custom_call.1} parent=31 // pred_check_branch
          %186 = sbr.rel (%p184) target = $region36
        $region35: #{tpu_custom_call.1} parent=31 // pred_region
          %s187 = sand.u32 %s27, 1
          %s188 = scalar_lea.sflag [#allocation3], %s187
          %s189 = sand.u32 %s27, 1
          %s190 = smul.addr %s189, 64
          %s191 = scalar_lea.vmem [#allocation2], %s190
          %s193 = ssub.s32 1024, 1024
          %194 = vsyncadd %s188, %s193
          %s195 = smul.addr %s17, 8
          %s196 = smul.addr %s195, 128
          %s197 = scalar_lea.hbm %s0, %s196
          %s198 = sshll.u32 %s191, 4
          %s199 = int_to_ptr.vmem [resolvable:$true] %s198
          %204 = dma.hbm_to_vmem [thread:$0]  %s197, 1024, %s199, %s188, 512, 512, 32
        $region36: #{tpu_custom_call.1} parent=31 // pred_fallthru
          _
      $region32: #{tpu_custom_call.1} parent=5 // pred_fallthru
        _
      %p205 = scmp.le.s32.totalorder 1, %s17
      %p206 = scmp.lt.s32.totalorder %s17, 3
      %p207 = pnand %p205, %p206
      %p208 = pneg %p207
      // Predicated region
      $region37: #{tpu_custom_call.1} parent=5 // pred_check
        _
      $region38: #{tpu_custom_call.1} parent=5 // pred_check_branch
        %210 = sbr.rel (%p207) target = $region40
      $region39: #{tpu_custom_call.1} parent=5 // pred_region
        %s211 = ssub.s32 %s17, 1
        %s212 = sand.u32 %s30, 1
        %s213 = scalar_lea.sflag [#allocation3], %s212
        %s214 = sand.u32 %s30, 1
        %s215 = smul.addr %s214, 64
        %s216 = scalar_lea.vmem [#allocation2], %s215
        // Predicated region
        $region41: #{tpu_custom_call.1} parent=39 // pred_check
          %p217 = pneg %p43
        $region42: #{tpu_custom_call.1} parent=39 // pred_check_branch
          %219 = sbr.rel (%p217) target = $region44
        $region43: #{tpu_custom_call.1} parent=39 // pred_region
          %220 = dma.done %s213, 1024
        $region44: #{tpu_custom_call.1} parent=39 // pred_fallthru
          _
        %s221 = sand.u32 %s30, 1
        %s222 = scalar_lea.sflag [#allocation3], %s221
        %s223 = sand.u32 %s30, 1
        %s224 = smul.addr %s223, 64
        %s225 = scalar_lea.vmem [#allocation2], %s224
        %p226 = pneg %p43
        %p227 = pneg %p40
        %p228 = pneg %p64
        %p229 = pneg %p61
        %p230 = pneg %p85
        %p231 = pneg %p82
        %p232 = pneg %p106
        %p233 = pneg %p103
        %p234 = pneg %p127
        %p235 = pneg %p124
        %p236 = pneg %p153
        %p237 = pneg %p150
        %s238 = sand.u32 %s140, 1
        %s239 = scalar_lea.sflag [#allocation4], %s238
        %s240 = sand.u32 %s140, 1
        %s241 = smul.addr %s240, 64
        %s242 = scalar_lea.vmem [#allocation5], %s241
        %v243 = vld [vmem:[%s216] sm:$0xff]
        %v244 = vld [vmem:[%s216 + $0x8] sm:$0xff]
        %v245 = vld [vmem:[%s216 + $0x10] sm:$0xff]
        %v246 = vld [vmem:[%s216 + $0x18] sm:$0xff]
        %v247 = vld [vmem:[%s216 + $0x20] sm:$0xff]
        %v248 = vld [vmem:[%s216 + $0x28] sm:$0xff]
        %v249 = vld [vmem:[%s216 + $0x30] sm:$0xff]
        %v250 = vld [vmem:[%s216 + $0x38] sm:$0xff]
        %v251 = vadd.f32 %v243, %v244
        %v252 = vadd.f32 %v251, %v245
        %v253 = vadd.f32 %v252, %v246
        %254 = vadd.xlane.f32.xlu0 %v253
        %v255 = vpop.xlane.xlu0 %254
        %v256 = vadd.f32 %v247, %v248
        %v257 = vadd.f32 %v256, %v249
        %v258 = vadd.f32 %v257, %v250
        %259 = vadd.xlane.f32.xlu0 %v258
        %v260 = vpop.xlane.xlu0 %259
        %v261 = vmul.f32 %v255, 0.001984127
        %v262 = vmul.f32 %v260, 0.001984127
        %v263 = vld [vmem:[%s1] sm:$0xff]
        %v264 = vld [vmem:[%s2] sm:$0xff]
        %vm265 = vcmask 130048
        %v267 = vsel %vm265, %v263, 0
        %269 = vmatprep.subr.mxu0 0.0
        %270 = vmatpush1.msra.mxu0 %v261
        %271 = vmatprep.subr.mxu0 0.0
        %272 = vmatpush1.msra.mxu0 %v262
        %273 = vmatprep.subr.mxu0 0.0
        %274 = vmatpush1.msra.mxu0 0.0
        %275 = vmatprep.subr.mxu0 0.0
        %276 = vmatpush1.msra.mxu0 0.0
        %277 = vmatprep.subr.mxu0 0.0
        %278 = vmatpush1.msra.mxu0 0.0
        %279 = vmatprep.subr.mxu0 0.0
        %280 = vmatpush1.msra.mxu0 0.0
        %281 = vmatprep.subr.mxu0 0.0
        %282 = vmatpush1.msra.mxu0 0.0
        %283 = vmatprep.subr.mxu0 0.0
        %284 = vmatpush1.msra.mxu0 0.0
        %285 = vmatprep.subr.mxu0 0.0
        %286 = vmatpush1.msra.mxu0 0.0
        %287 = vmatprep.subr.mxu0 0.0
        %288 = vmatpush1.msra.mxu0 0.0
        %289 = vmatprep.subr.mxu0 0.0
        %290 = vmatpush1.msra.mxu0 0.0
        %291 = vmatprep.subr.mxu0 0.0
        %292 = vmatpush1.msra.mxu0 0.0
        %293 = vmatprep.subr.mxu0 0.0
        %294 = vmatpush1.msra.mxu0 0.0
        %295 = vmatprep.subr.mxu0 0.0
        %296 = vmatpush1.msra.mxu0 0.0
        %297 = vmatprep.subr.mxu0 0.0
        %298 = vmatpush1.msra.mxu0 0.0
        %299 = vmatprep.subr.mxu0 0.0
        %300 = vmatpush1.msra.mxu0 0.0
        %301 = vmatprep.subr.mxu0 0.0
        %302 = vmatpush1.msra.mxu0 0.0
        %303 = vmatprep.subr.mxu0 0.0
        %304 = vmatpush1.msra.mxu0 0.0
        %305 = vmatprep.subr.mxu0 0.0
        %306 = vmatpush1.msra.mxu0 0.0
        %307 = vmatprep.subr.mxu0 0.0
        %308 = vmatpush1.msra.mxu0 0.0
        %309 = vmatprep.subr.mxu0 0.0
        %310 = vmatpush1.msra.mxu0 0.0
        %311 = vmatprep.subr.mxu0 0.0
        %312 = vmatpush1.msra.mxu0 0.0
        %313 = vmatprep.subr.mxu0 0.0
        %314 = vmatpush1.msra.mxu0 0.0
        %315 = vmatprep.subr.mxu0 0.0
        %316 = vmatpush1.msra.mxu0 0.0
        %317 = vmatprep.subr.mxu0 0.0
        %318 = vmatpush1.msra.mxu0 0.0
        %319 = vmatprep.subr.mxu0 0.0
        %320 = vmatpush1.msra.mxu0 0.0
        %321 = vmatprep.subr.mxu0 0.0
        %322 = vmatpush1.msra.mxu0 0.0
        %323 = vmatprep.subr.mxu0 0.0
        %324 = vmatpush1.msra.mxu0 0.0
        %325 = vmatprep.subr.mxu0 0.0
        %326 = vmatpush1.msra.mxu0 0.0
        %327 = vmatprep.subr.mxu0 0.0
        %328 = vmatpush1.msra.mxu0 0.0
        %329 = vmatprep.subr.mxu0 0.0
        %330 = vmatpush1.msra.mxu0 0.0
        %331 = vmatprep.subr.mxu0 0.0
        %332 = vmatpush1.msra.mxu0 0.0
        %333 = vmatprep.mubr.f32.mxu0 0.0
        %334 = vmatmul.mubr.f32.gmra.mrb[0].mxu0 %v267
        %v335 = vpop.f32.mrb[0].mxu0
        %v336 = vadd.f32 %v264, %v335
        %v337 = vpop.f32.mrb[0].mxu0
        %338 = vdwg.mxu0
        %v339 = vmax.f32 %v336, 0.0
        %v340 = vld [vmem:[%s3] sm:$0xff]
        %v341 = vld [vmem:[%s3 + $0x8] sm:$0xff]
        %v342 = vld [vmem:[%s4] sm:$0xff]
        %v343 = vld [vmem:[%s4 + $0x8] sm:$0xff]
        %vm344 = vcmask 64512
        %v346 = vsel %vm344, %v340, 0
        %v349 = vsel %vm344, %v341, 0
        %351 = vmatprep.subr.mxu0 0.0
        %352 = vmatpush1.msra.mxu0 %v339
        %353 = vmatprep.subr.mxu0 0.0
        %354 = vmatpush1.msra.mxu0 0.0
        %355 = vmatprep.subr.mxu0 0.0
        %356 = vmatpush1.msra.mxu0 0.0
        %357 = vmatprep.subr.mxu0 0.0
        %358 = vmatpush1.msra.mxu0 0.0
        %359 = vmatprep.subr.mxu0 0.0
        %360 = vmatpush1.msra.mxu0 0.0
        %361 = vmatprep.subr.mxu0 0.0
        %362 = vmatpush1.msra.mxu0 0.0
        %363 = vmatprep.subr.mxu0 0.0
        %364 = vmatpush1.msra.mxu0 0.0
        %365 = vmatprep.subr.mxu0 0.0
        %366 = vmatpush1.msra.mxu0 0.0
        %367 = vmatprep.subr.mxu0 0.0
        %368 = vmatpush1.msra.mxu0 0.0
        %369 = vmatprep.subr.mxu0 0.0
        %370 = vmatpush1.msra.mxu0 0.0
        %371 = vmatprep.subr.mxu0 0.0
        %372 = vmatpush1.msra.mxu0 0.0
        %373 = vmatprep.subr.mxu0 0.0
        %374 = vmatpush1.msra.mxu0 0.0
        %375 = vmatprep.subr.mxu0 0.0
        %376 = vmatpush1.msra.mxu0 0.0
        %377 = vmatprep.subr.mxu0 0.0
        %378 = vmatpush1.msra.mxu0 0.0
        %379 = vmatprep.subr.mxu0 0.0
        %380 = vmatpush1.msra.mxu0 0.0
        %381 = vmatprep.subr.mxu0 0.0
        %382 = vmatpush1.msra.mxu0 0.0
        %383 = vmatprep.subr.mxu0 0.0
        %384 = vmatpush1.msra.mxu0 0.0
        %385 = vmatprep.subr.mxu0 0.0
        %386 = vmatpush1.msra.mxu0 0.0
        %387 = vmatprep.subr.mxu0 0.0
        %388 = vmatpush1.msra.mxu0 0.0
        %389 = vmatprep.subr.mxu0 0.0
        %390 = vmatpush1.msra.mxu0 0.0
        %391 = vmatprep.subr.mxu0 0.0
        %392 = vmatpush1.msra.mxu0 0.0
        %393 = vmatprep.subr.mxu0 0.0
        %394 = vmatpush1.msra.mxu0 0.0
        %395 = vmatprep.subr.mxu0 0.0
        %396 = vmatpush1.msra.mxu0 0.0
        %397 = vmatprep.subr.mxu0 0.0
        %398 = vmatpush1.msra.mxu0 0.0
        %399 = vmatprep.subr.mxu0 0.0
        %400 = vmatpush1.msra.mxu0 0.0
        %401 = vmatprep.subr.mxu0 0.0
        %402 = vmatpush1.msra.mxu0 0.0
        %403 = vmatprep.subr.mxu0 0.0
        %404 = vmatpush1.msra.mxu0 0.0
        %405 = vmatprep.subr.mxu0 0.0
        %406 = vmatpush1.msra.mxu0 0.0
        %407 = vmatprep.subr.mxu0 0.0
        %408 = vmatpush1.msra.mxu0 0.0
        %409 = vmatprep.subr.mxu0 0.0
        %410 = vmatpush1.msra.mxu0 0.0
        %411 = vmatprep.subr.mxu0 0.0
        %412 = vmatpush1.msra.mxu0 0.0
        %413 = vmatprep.subr.mxu0 0.0
        %414 = vmatpush1.msra.mxu0 0.0
        %415 = vmatprep.mubr.f32.mxu0 0.0
        %416 = vmatmul.mubr.f32.gmra.mrb[0].mxu0 %v346
        %v417 = vpop.f32.mrb[0].mxu0
        %v418 = vadd.f32 %v342, %v417
        %v419 = vpop.f32.mrb[0].mxu0
        %420 = vmatprep.mubr.f32.mxu0 0.0
        %421 = vmatmul.mubr.f32.gmra.mrb[0].mxu0 %v349
        %v422 = vpop.f32.mrb[0].mxu0
        %v423 = vadd.f32 %v343, %v422
        %v424 = vpop.f32.mrb[0].mxu0
        %425 = vdwg.mxu0
        %v426 = vxor.u32 %v418, 2147483648
        %v427 = vxor.u32 %v423, 2147483648
        %v428 = vmul.f32 %v426, 1.442695
        %v429 = vpow.pop %v428
        %v430 = vmul.f32 %v427, 1.442695
        %v431 = vpow.pop %v430
        %v432 = vadd.f32 %v429, 1.0
        %v433 = vadd.f32 %v431, 1.0
        %v434 = vrcp.pop %v432
        %v435 = vmul.f32 1.0, %v434
        %v436 = vrcp.pop %v433
        %v437 = vmul.f32 1.0, %v436
        %439 = vset.pattern.permute.xlu0 0
        %440 = vperm.xlu0 %439, %v435
        %v441 = vpop.permute.xlu0 %440
        %444 = vset.pattern.permute.xlu0 0
        %445 = vperm.xlu0 %444, %v437
        %v446 = vpop.permute.xlu0 %445
        %v448 = vmul.f32 %v243, %v441
        %v449 = vmul.f32 %v244, %v441
        %v450 = vmul.f32 %v245, %v441
        %v451 = vmul.f32 %v246, %v441
        %v452 = vmul.f32 %v247, %v446
        %v453 = vmul.f32 %v248, %v446
        %v454 = vmul.f32 %v249, %v446
        %v455 = vmul.f32 %v250, %v446
        %456 = vst [vmem:[%s242] sm:$0xff] %v448
        %457 = vst [vmem:[%s242 + $0x8] sm:$0xff] %v449
        %458 = vst [vmem:[%s242 + $0x10] sm:$0xff] %v450
        %459 = vst [vmem:[%s242 + $0x18] sm:$0xff] %v451
        %460 = vst [vmem:[%s242 + $0x20] sm:$0xff] %v452
        %461 = vst [vmem:[%s242 + $0x28] sm:$0xff] %v453
        %462 = vst [vmem:[%s242 + $0x30] sm:$0xff] %v454
        %463 = vst [vmem:[%s242 + $0x38] sm:$0xff] %v455
        %s464 = sand.u32 %s140, 1
        %s465 = scalar_lea.sflag [#allocation4], %s464
        %s466 = sand.u32 %s140, 1
        %s467 = smul.addr %s466, 64
        %s468 = scalar_lea.vmem [#allocation5], %s467
        // Predicated region
        $region45: #{tpu_custom_call.1} parent=39 // pred_check
          %p469 = pneg %p150
        $region46: #{tpu_custom_call.1} parent=39 // pred_check_branch
          %471 = sbr.rel (%p469) target = $region48
        $region47: #{tpu_custom_call.1} parent=39 // pred_region
          %s473 = ssub.s32 1024, 1024
          %474 = vsyncadd %s465, %s473
          %s475 = smul.addr %s22, 8
          %s476 = smul.addr %s475, 128
          %s477 = scalar_lea.hbm %s5, %s476
          %s478 = sshll.u32 %s468, 4
          %s479 = int_to_ptr.vmem [resolvable:$true] %s478
          %484 = dma.vmem_to_hbm [thread:$0]  %s479, 1024, %s477, %s465, 512, 512, 32
        $region48: #{tpu_custom_call.1} parent=39 // pred_fallthru
          _
      $region40: #{tpu_custom_call.1} parent=5 // pred_fallthru
        _
      %p485 = scmp.le.s32.totalorder 2, %s17
      // Predicated region
      $region49: #{tpu_custom_call.1} parent=5 // pred_check
        %p486 = pneg %p485
      $region50: #{tpu_custom_call.1} parent=5 // pred_check_branch
        %488 = sbr.rel (%p486) target = $region52
      $region51: #{tpu_custom_call.1} parent=5 // pred_region
        %s489 = ssub.s32 %s17, 2
        // Predicated region
        $region53: #{tpu_custom_call.1} parent=51 // pred_check
          %p490 = pneg %p156
        $region54: #{tpu_custom_call.1} parent=51 // pred_check_branch
          %492 = sbr.rel (%p490) target = $region56
        $region55: #{tpu_custom_call.1} parent=51 // pred_region
          %s493 = sand.u32 %s141, 1
          %s494 = scalar_lea.sflag [#allocation4], %s493
          %s495 = sand.u32 %s141, 1
          %s496 = smul.addr %s495, 64
          %s497 = scalar_lea.vmem [#allocation5], %s496
          %498 = dma.done %s494, 1024
        $region56: #{tpu_custom_call.1} parent=51 // pred_fallthru
          _
      $region52: #{tpu_custom_call.1} parent=5 // pred_fallthru
        _
    $region6: #{tpu_custom_call.1} parent=1 // loop_footer
      %s21 = sadd.s32 1, %s17
    $region7: #{tpu_custom_call.1} parent=1 // loop_footer_branch
      %16 = sbr.rel target = $region3
    $region8: #{tpu_custom_call.1} parent=1 // loop_exit
      _
    %499 = vsyncpa [#allocation3], 1
    %s500 = scalar_lea.sflag [#allocation3], 1
    %501 = vsyncpa %s500, 1
    %502 = vsyncpa [#allocation4], 1
    %s503 = scalar_lea.sflag [#allocation4], 1
    %504 = vsyncpa %s503, 1

</llo_original>
